<compile_context>
chip_gen: v6e
topology: v6e:2x2x1
jax: 0.10.0
libtpu: 0.0.40
codegen_flags: <defaults>
</compile_context>

<pallas_src>
import jax
import jax.numpy as jnp
from jax import lax
from jax.experimental import pallas as pl
from jax.experimental.pallas import tpu as pltpu

MQ_GLIP_THRESHOLD = 0.5   # matches __init__ default mq_glip_threshold
_LANE = 128
_BIG = 1 << 30


def _round_up(x, m):
    return ((x + m - 1) // m) * m


# ---------------------------------------------------------------------------
# Kernel 1: grounding scores
#   scores = sigmoid(text_embs @ region_feats^T)       (detection scores)
# bf16 operands on the MXU, f32 accumulation; contraction on D done inside the
# kernel (no wrapper transpose).  Grid tiles the region axis R (parallel).
# ---------------------------------------------------------------------------
def _grounding_kernel(text_ref, feats_ref, scores_ref):
    logits = lax.dot_general(
        text_ref[...], feats_ref[...],
        dimension_numbers=(((1,), (1,)), ((), ())),   # contract D of both
        preferred_element_type=jnp.float32)
    scores_ref[...] = jax.nn.sigmoid(logits)


def grounding_scores(text_embs, region_feats, *, tile_r=512):
    P, D = text_embs.shape
    R, D2 = region_feats.shape
    assert D == D2
    Pp = _round_up(P, 8)
    Dp = _round_up(D, _LANE)
    tile_r = min(tile_r, _round_up(R, _LANE))   # lane-dense output tiles
    Rp = _round_up(R, tile_r)

    text = jnp.pad(text_embs, ((0, Pp - P), (0, Dp - D))).astype(jnp.bfloat16)
    feats = jnp.pad(region_feats, ((0, Rp - R), (0, Dp - D))).astype(jnp.bfloat16)

    scores_full = pl.pallas_call(
        _grounding_kernel,
        out_shape=jax.ShapeDtypeStruct((Pp, Rp), jnp.float32),
        grid=(Rp // tile_r,),
        in_specs=[pl.BlockSpec((Pp, Dp), lambda j: (0, 0)),
                  pl.BlockSpec((tile_r, Dp), lambda j: (j, 0))],
        out_specs=pl.BlockSpec((Pp, tile_r), lambda j: (0, j)),
        compiler_params=pltpu.CompilerParams(
            dimension_semantics=("parallel",)),
    )(text, feats)
    return scores_full[:P, :R]


# ---------------------------------------------------------------------------
# Kernel 2: SAM2 mask threshold + mask_to_box
#   binary_mask = mask_logits > 0.0            (_convert_mask)
#   box         = [xmin, ymin, xmax, ymax]     (mask_to_box; zeros if empty)
# Layout: masks flattened to (N, H*W) and padded to lane multiples.  Grid is
# (mask-blocks [parallel], H*W tiles [arbitrary]); running min/max accumulators
# live in VMEM scratch and are finalized on the last H*W tile.
# ---------------------------------------------------------------------------
def _mask_box_kernel(logits_ref, col_ref, row_ref, mask_ref, box_ref,
                     xmin_s, ymin_s, xmax_s, ymax_s):
    j = pl.program_id(1)

    @pl.when(j == 0)
    def _init():
        xmin_s[...] = jnp.full(xmin_s.shape, _BIG, dtype=jnp.int32)
        ymin_s[...] = jnp.full(ymin_s.shape, _BIG, dtype=jnp.int32)
        xmax_s[...] = jnp.full(xmax_s.shape, -1, dtype=jnp.int32)
        ymax_s[...] = jnp.full(ymax_s.shape, -1, dtype=jnp.int32)

    x = logits_ref[...]                       # (B, hw_tile) f32, lane-dense
    m = x > 0.0
    mask_ref[...] = m.astype(jnp.int8)        # no separate bool-cast pass

    col = col_ref[...]                        # (1, hw_tile) int32
    row = row_ref[...]
    xmin_s[...] = jnp.minimum(
        xmin_s[...], jnp.min(jnp.where(m, col, _BIG), axis=1, keepdims=True))
    ymin_s[...] = jnp.minimum(
        ymin_s[...], jnp.min(jnp.where(m, row, _BIG), axis=1, keepdims=True))
    xmax_s[...] = jnp.maximum(
        xmax_s[...], jnp.max(jnp.where(m, col, -1), axis=1, keepdims=True))
    ymax_s[...] = jnp.maximum(
        ymax_s[...], jnp.max(jnp.where(m, row, -1), axis=1, keepdims=True))

    @pl.when(j == pl.num_programs(1) - 1)
    def _finalize():
        bsz = box_ref.shape[0]
        any_row = xmax_s[...] >= 0            # (B, 1) -- empty-mask handling
        lane = lax.broadcasted_iota(jnp.int32, (bsz, _LANE), 1)
        box = jnp.where(lane == 0, xmin_s[...],
              jnp.where(lane == 1, ymin_s[...],
              jnp.where(lane == 2, xmax_s[...],
              jnp.where(lane == 3, ymax_s[...], 0))))
        box_ref[...] = jnp.where(any_row, box, 0).astype(jnp.float32)


def sam2_masks_and_boxes(mask_logits, *, hw_tile_target=64 * 1024,
                         masks_per_block=8):
    N, H, W = mask_logits.shape
    HW = H * W

    # lane-dense H*W tiling (multiple of 128); tile size bounded so that
    # double-buffered blocks stay well under v7x's 64 MiB VMEM and
    # v5e's 16 MiB default scoped limit.
    hw_tile = min(_round_up(HW, _LANE), hw_tile_target)
    HWp = _round_up(HW, hw_tile)

    if N <= 32:
        Bn, Np = N, N                          # block == full dim, no N pad
    else:
        Bn = masks_per_block
        Np = _round_up(N, Bn)

    flat = mask_logits.reshape(N, HW)          # metadata-only reshape
    if (Np, HWp) != (N, HW):
        flat = jnp.pad(flat, ((0, Np - N), (0, HWp - HW)),
                       constant_values=-1.0)   # padding -> mask == 0

    # Precomputed row/col index maps (avoid in-kernel integer div/mod).
    idx = jnp.arange(HWp, dtype=jnp.int32)
    col_idx = (idx % W).reshape(1, HWp)
    row_idx = (idx // W).reshape(1, HWp)

    grid = (Np // Bn, HWp // hw_tile)

    masks_full, boxes_full = pl.pallas_call(
        _mask_box_kernel,
        out_shape=(jax.ShapeDtypeStruct((Np, HWp), jnp.int8),
                   jax.ShapeDtypeStruct((Np, _LANE), jnp.float32)),
        grid=grid,
        in_specs=[pl.BlockSpec((Bn, hw_tile), lambda i, j: (i, j)),
                  pl.BlockSpec((1, hw_tile), lambda i, j: (0, j)),
                  pl.BlockSpec((1, hw_tile), lambda i, j: (0, j))],
        out_specs=(pl.BlockSpec((Bn, hw_tile), lambda i, j: (i, j)),
                   pl.BlockSpec((Bn, _LANE), lambda i, j: (i, 0))),
        scratch_shapes=[pltpu.VMEM((Bn, 1), jnp.int32)] * 4,
        compiler_params=pltpu.CompilerParams(
            dimension_semantics=("parallel", "arbitrary"),
            vmem_limit_bytes=32 * 1024 * 1024),
    )(flat, col_idx, row_idx)

    masks = masks_full
    if (Np, HWp) != (N, HW):
        masks = masks[:N, :HW]
    masks = masks.reshape(N, H, W)             # int8 0/1 mask (no bool cast)
    boxes = boxes_full[:N, :4]
    return masks, boxes


# ---------------------------------------------------------------------------
# Wrapper mirroring MQGLIPSam2JointModel.forward() at tensor level.
# TODO(synk): MQ-GLIP backbone / BERT text encoder / fusion head are external
#             checkpointed models; only their post-processing math is kerneled
#             (synthetic region features / text embeddings stand in for them).
# TODO(synk): SAM2 init_state / add_new_points_or_box / propagate_in_video is a
#             full recurrent video model; only mask thresholding + mask_to_box
#             from its output path is kerneled.
# TODO(synk): get_frame_paths / PIL image loading / rle_encode are host-side,
#             sequential, non-tensor ops with no Pallas equivalent.
# ---------------------------------------------------------------------------
def mq_glip_sam2_forward(text_embs, region_feats, boxes_model, scale_xyxy,
                         mask_logits, threshold=MQ_GLIP_THRESHOLD):
    scores = grounding_scores(text_embs, region_feats)      # Pallas (MXU)
    keep = scores > threshold            # _post_process threshold (plain JAX)
    grounding_boxes = boxes_model * scale_xyxy   # .resize(orig size), XLA fuses
    masks_i8, tracked_boxes = sam2_masks_and_boxes(mask_logits)
    return {
        "grounding_results": {"scores": scores, "keep": keep,
                              "bbox": grounding_boxes},
        "tracking_results": {"masks": masks_i8, "boxes": tracked_boxes},
    }


if __name__ == "__main__":
    key = jax.random.PRNGKey(0)
    k1, k2, k3, k4 = jax.random.split(key, 4)

    P, R, D = 2, 8, 32          # prompts, candidate regions, feature dim
    T, O = 3, 2                 # video frames, tracked objects
    H, W = 16, 16               # mask resolution

    text_embs = jax.random.normal(k1, (P, D), dtype=jnp.float32)
    region_feats = jax.random.normal(k2, (R, D), dtype=jnp.float32) * 0.1

    # boxes in model-image (800x800) coordinates, xyxy
    xy0 = jax.random.uniform(k3, (R, 2), minval=0.0, maxval=400.0)
    wh = jax.random.uniform(k4, (R, 2), minval=10.0, maxval=300.0)
    boxes_model = jnp.concatenate([xy0, xy0 + wh], axis=1).astype(jnp.float32)

    # resize from model image (800x800) back to original image size (960x540)
    sx, sy = 960.0 / 800.0, 540.0 / 800.0
    scale_xyxy = jnp.array([[sx, sy, sx, sy]], dtype=jnp.float32)

    # SAM2 output mask logits for (T frames x O objects)
    mask_logits = jax.random.normal(jax.random.PRNGKey(7), (T * O, H, W),
                                    dtype=jnp.float32)

    fwd = jax.jit(mq_glip_sam2_forward)
    out = fwd(text_embs, region_feats, boxes_model, scale_xyxy, mask_logits)
    jax.block_until_ready(out)

    # --- light correctness checks against plain-JAX references ---
    # scores (bf16 MXU operands -> loose tolerance)
    ref_scores = jax.nn.sigmoid(text_embs @ region_feats.T)
    assert jnp.allclose(out["grounding_results"]["scores"], ref_scores,
                        atol=3e-2)
    # rescaled boxes (exact)
    ref_boxes = boxes_model * scale_xyxy
    assert jnp.allclose(out["grounding_results"]["bbox"], ref_boxes, atol=1e-5)
    # binary masks
    ref_mask = mask_logits > 0.0
    assert jnp.array_equal(out["tracking_results"]["masks"] != 0, ref_mask)
    # mask_to_box
    N = T * O
    cols = jnp.broadcast_to(jnp.arange(W), (N, H, W))
    rows = jnp.broadcast_to(jnp.arange(H)[:, None], (N, H, W))
    anym = ref_mask.any(axis=(1, 2))
    xmin = jnp.where(ref_mask, cols, _BIG).min(axis=(1, 2))
    ymin = jnp.where(ref_mask, rows, _BIG).min(axis=(1, 2))
    xmax = jnp.where(ref_mask, cols, -1).max(axis=(1, 2))
    ymax = jnp.where(ref_mask, rows, -1).max(axis=(1, 2))
    ref_box = jnp.stack([xmin, ymin, xmax, ymax], axis=1).astype(jnp.float32)
    ref_box = jnp.where(anym[:, None], ref_box, 0.0)
    assert jnp.allclose(out["tracking_results"]["boxes"], ref_box, atol=1e-5)

    print("KERNEL_OK")
</pallas_src>

<mosaic_0001>
module attributes {stable_mosaic.version = 11 : i64} {
  func.func @_grounding_kernel(%arg0: i32, %arg1: memref<8x128xbf16, #tpu.memory_space<vmem>>, %arg2: memref<128x128xbf16, #tpu.memory_space<vmem>>, %arg3: memref<8x128xf32, #tpu.memory_space<vmem>>) attributes {dimension_semantics = [#tpu.dimension_semantics<parallel>], iteration_bounds = array<i64: 1>, scalar_prefetch = 0 : i64, scratch_operands = 0 : i64, tpu.core_type = #tpu.core_type<tc>, window_params = [{pipeline_mode = #tpu.pipeline_mode<synchronous>, transform_indices = @transform_0, window_bounds = array<i64: 8, 128>}, {transform_indices = @transform_1, window_bounds = array<i64: 128, 128>}, {transform_indices = @transform_2, window_bounds = array<i64: 8, 128>}]} {
    %c0 = arith.constant 0 : index
    %c0_0 = arith.constant 0 : index
    %0 = vector.load %arg1[%c0, %c0_0] : memref<8x128xbf16, #tpu.memory_space<vmem>>, vector<8x128xbf16>
    %c0_1 = arith.constant 0 : index
    %c0_2 = arith.constant 0 : index
    %1 = vector.load %arg2[%c0_1, %c0_2] : memref<128x128xbf16, #tpu.memory_space<vmem>>, vector<128x128xbf16>
    %cst = arith.constant dense<0.000000e+00> : vector<8x128xf32>
    %2 = tpu.matmul %0, %1, %cst {dimension_numbers = #tpu.dot_dimension_numbers<[1], [1], [0], [0], [0, 0, 1, 0], [], []>} : vector<8x128xbf16>, vector<128x128xbf16>, vector<8x128xf32> -> vector<8x128xf32>
    %3 = arith.negf %2 : vector<8x128xf32>
    %4 = math.exp %3 : vector<8x128xf32>
    %cst_3 = arith.constant 1.000000e+00 : f32
    %5 = vector.broadcast %cst_3 : f32 to vector<8x128xf32>
    %6 = arith.addf %5, %4 : vector<8x128xf32>
    %7 = arith.divf %5, %6 : vector<8x128xf32>
    %c0_4 = arith.constant 0 : index
    %c0_5 = arith.constant 0 : index
    %8 = vector.load %arg3[%c0_4, %c0_5] : memref<8x128xf32, #tpu.memory_space<vmem>>, vector<8x128xf32>
    tpu.vector_store %arg3[%c0_4, %c0_5], %7 {strides = array<i32>} : memref<8x128xf32, #tpu.memory_space<vmem>>, vector<8x128xf32>,
    return
  }
  func.func @transform_0(%arg0: i32) -> (i32, i32) {
    %c0_i32 = arith.constant 0 : i32
    %c0_i32_0 = arith.constant 0 : i32
    %c0_i32_1 = arith.constant 0 : i32
    return %c0_i32, %c0_i32_0 : i32, i32
  }
  func.func @transform_1(%arg0: i32) -> (i32, i32) {
    %c0_i32 = arith.constant 0 : i32
    %c0_i32_0 = arith.constant 0 : i32
    return %arg0, %c0_i32 : i32, i32
  }
  func.func @transform_2(%arg0: i32) -> (i32, i32) {
    %c0_i32 = arith.constant 0 : i32
    %c0_i32_0 = arith.constant 0 : i32
    return %c0_i32, %arg0 : i32, i32
  }
}

module attributes {stable_mosaic.version = 11 : i64} {
  func.func @_mask_box_kernel(%arg0: i32, %arg1: i32, %arg2: memref<6x256xf32, #tpu.memory_space<vmem>>, %arg3: memref<1x256xi32, #tpu.memory_space<vmem>>, %arg4: memref<1x256xi32, #tpu.memory_space<vmem>>, %arg5: memref<6x256xi8, #tpu.memory_space<vmem>>, %arg6: memref<6x128xf32, #tpu.memory_space<vmem>>, %arg7: memref<6x1xi32, #tpu.memory_space<vmem>>, %arg8: memref<6x1xi32, #tpu.memory_space<vmem>>, %arg9: memref<6x1xi32, #tpu.memory_space<vmem>>, %arg10: memref<6x1xi32, #tpu.memory_space<vmem>>) attributes {dimension_semantics = [#tpu.dimension_semantics<parallel>, #tpu.dimension_semantics<arbitrary>], iteration_bounds = array<i64: 1, 1>, scalar_prefetch = 0 : i64, scratch_operands = 4 : i64, tpu.core_type = #tpu.core_type<tc>, window_params = [{transform_indices = @transform_0, window_bounds = array<i64: 6, 256>}, {transform_indices = @transform_1, window_bounds = array<i64: 1, 256>}, {transform_indices = @transform_2, window_bounds = array<i64: 1, 256>}, {transform_indices = @transform_3, window_bounds = array<i64: 6, 256>}, {transform_indices = @transform_4, window_bounds = array<i64: 6, 128>}]} {
    %c0_i32 = arith.constant 0 : i32
    %0 = arith.cmpi eq, %arg1, %c0_i32 : i32
    %1 = arith.extui %0 : i1 to i32
    %c0_i32_0 = arith.constant 0 : i32
    %2 = arith.cmpi ne, %1, %c0_i32_0 : i32
    scf.if %2 {
      %c1073741824_i32_32 = arith.constant 1073741824 : i32
      %49 = vector.broadcast %c1073741824_i32_32 : i32 to vector<6x1xi32>
      %c0_33 = arith.constant 0 : index
      %c0_34 = arith.constant 0 : index
      %50 = vector.load %arg7[%c0_33, %c0_34] : memref<6x1xi32, #tpu.memory_space<vmem>>, vector<6x1xi32>
      tpu.vector_store %arg7[%c0_33, %c0_34], %49 {strides = array<i32>} : memref<6x1xi32, #tpu.memory_space<vmem>>, vector<6x1xi32>,
      %c1073741824_i32_35 = arith.constant 1073741824 : i32
      %51 = vector.broadcast %c1073741824_i32_35 : i32 to vector<6x1xi32>
      %c0_36 = arith.constant 0 : index
      %c0_37 = arith.constant 0 : index
      %52 = vector.load %arg8[%c0_36, %c0_37] : memref<6x1xi32, #tpu.memory_space<vmem>>, vector<6x1xi32>
      tpu.vector_store %arg8[%c0_36, %c0_37], %51 {strides = array<i32>} : memref<6x1xi32, #tpu.memory_space<vmem>>, vector<6x1xi32>,
      %c-1_i32_38 = arith.constant -1 : i32
      %53 = vector.broadcast %c-1_i32_38 : i32 to vector<6x1xi32>
      %c0_39 = arith.constant 0 : index
      %c0_40 = arith.constant 0 : index
      %54 = vector.load %arg9[%c0_39, %c0_40] : memref<6x1xi32, #tpu.memory_space<vmem>>, vector<6x1xi32>
      tpu.vector_store %arg9[%c0_39, %c0_40], %53 {strides = array<i32>} : memref<6x1xi32, #tpu.memory_space<vmem>>, vector<6x1xi32>,
      %c-1_i32_41 = arith.constant -1 : i32
      %55 = vector.broadcast %c-1_i32_41 : i32 to vector<6x1xi32>
      %c0_42 = arith.constant 0 : index
      %c0_43 = arith.constant 0 : index
      %56 = vector.load %arg10[%c0_42, %c0_43] : memref<6x1xi32, #tpu.memory_space<vmem>>, vector<6x1xi32>
      tpu.vector_store %arg10[%c0_42, %c0_43], %55 {strides = array<i32>} : memref<6x1xi32, #tpu.memory_space<vmem>>, vector<6x1xi32>,
    } else {
    }
    %c0 = arith.constant 0 : index
    %c0_1 = arith.constant 0 : index
    %3 = vector.load %arg2[%c0, %c0_1] : memref<6x256xf32, #tpu.memory_space<vmem>>, vector<6x256xf32>
    %cst = arith.constant 0.000000e+00 : f32
    %4 = vector.broadcast %cst : f32 to vector<6x256xf32>
    %5 = arith.cmpf ogt, %3, %4 : vector<6x256xf32>
    %6 = arith.extui %5 : vector<6x256xi1> to vector<6x256xi8>
    %c0_2 = arith.constant 0 : index
    %c0_3 = arith.constant 0 : index
    %7 = vector.load %arg5[%c0_2, %c0_3] : memref<6x256xi8, #tpu.memory_space<vmem>>, vector<6x256xi8>
    tpu.vector_store %arg5[%c0_2, %c0_3], %6 {strides = array<i32>} : memref<6x256xi8, #tpu.memory_space<vmem>>, vector<6x256xi8>,
    %c0_4 = arith.constant 0 : index
    %c0_5 = arith.constant 0 : index
    %8 = vector.load %arg3[%c0_4, %c0_5] : memref<1x256xi32, #tpu.memory_space<vmem>>, vector<1x256xi32>
    %c0_6 = arith.constant 0 : index
    %c0_7 = arith.constant 0 : index
    %9 = vector.load %arg4[%c0_6, %c0_7] : memref<1x256xi32, #tpu.memory_space<vmem>>, vector<1x256xi32>
    %c0_8 = arith.constant 0 : index
    %c0_9 = arith.constant 0 : index
    %10 = vector.load %arg7[%c0_8, %c0_9] : memref<6x1xi32, #tpu.memory_space<vmem>>, vector<6x1xi32>
    %c1073741824_i32 = arith.constant 1073741824 : i32
    %11 = vector.shape_cast %8 : vector<1x256xi32> to vector<1x256xi32>
    %12 = vector.broadcast %11 : vector<1x256xi32> to vector<6x256xi32>
    %13 = vector.broadcast %c1073741824_i32 : i32 to vector<6x256xi32>
    %14 = arith.select %5, %12, %13 : vector<6x256xi1>, vector<6x256xi32>
    %cst_10 = arith.constant dense<2147483647> : vector<6xi32>
    %15 = vector.multi_reduction <minsi>, %14, %cst_10 [1] : vector<6x256xi32> to vector<6xi32>
    %16 = vector.shape_cast %15 : vector<6xi32> to vector<6x1xi32>
    %17 = arith.minsi %10, %16 : vector<6x1xi32>
    %c0_11 = arith.constant 0 : index
    %c0_12 = arith.constant 0 : index
    %18 = vector.load %arg7[%c0_11, %c0_12] : memref<6x1xi32, #tpu.memory_space<vmem>>, vector<6x1xi32>
    tpu.vector_store %arg7[%c0_11, %c0_12], %17 {strides = array<i32>} : memref<6x1xi32, #tpu.memory_space<vmem>>, vector<6x1xi32>,
    %c0_13 = arith.constant 0 : index
    %c0_14 = arith.constant 0 : index
    %19 = vector.load %arg8[%c0_13, %c0_14] : memref<6x1xi32, #tpu.memory_space<vmem>>, vector<6x1xi32>
    %c1073741824_i32_15 = arith.constant 1073741824 : i32
    %20 = vector.shape_cast %9 : vector<1x256xi32> to vector<1x256xi32>
    %21 = vector.broadcast %20 : vector<1x256xi32> to vector<6x256xi32>
    %22 = vector.broadcast %c1073741824_i32_15 : i32 to vector<6x256xi32>
    %23 = arith.select %5, %21, %22 : vector<6x256xi1>, vector<6x256xi32>
    %cst_16 = arith.constant dense<2147483647> : vector<6xi32>
    %24 = vector.multi_reduction <minsi>, %23, %cst_16 [1] : vector<6x256xi32> to vector<6xi32>
    %25 = vector.shape_cast %24 : vector<6xi32> to vector<6x1xi32>
    %26 = arith.minsi %19, %25 : vector<6x1xi32>
    %c0_17 = arith.constant 0 : index
    %c0_18 = arith.constant 0 : index
    %27 = vector.load %arg8[%c0_17, %c0_18] : memref<6x1xi32, #tpu.memory_space<vmem>>, vector<6x1xi32>
    tpu.vector_store %arg8[%c0_17, %c0_18], %26 {strides = array<i32>} : memref<6x1xi32, #tpu.memory_space<vmem>>, vector<6x1xi32>,
    %c0_19 = arith.constant 0 : index
    %c0_20 = arith.constant 0 : index
    %28 = vector.load %arg9[%c0_19, %c0_20] : memref<6x1xi32, #tpu.memory_space<vmem>>, vector<6x1xi32>
    %c-1_i32 = arith.constant -1 : i32
    %29 = vector.shape_cast %8 : vector<1x256xi32> to vector<1x256xi32>
    %30 = vector.broadcast %29 : vector<1x256xi32> to vector<6x256xi32>
    %31 = vector.broadcast %c-1_i32 : i32 to vector<6x256xi32>
    %32 = arith.select %5, %30, %31 : vector<6x256xi1>, vector<6x256xi32>
    %cst_21 = arith.constant dense<-2147483648> : vector<6xi32>
    %33 = vector.multi_reduction <maxsi>, %32, %cst_21 [1] : vector<6x256xi32> to vector<6xi32>
    %34 = vector.shape_cast %33 : vector<6xi32> to vector<6x1xi32>
    %35 = arith.maxsi %28, %34 : vector<6x1xi32>
    %c0_22 = arith.constant 0 : index
    %c0_23 = arith.constant 0 : index
    %36 = vector.load %arg9[%c0_22, %c0_23] : memref<6x1xi32, #tpu.memory_space<vmem>>, vector<6x1xi32>
    tpu.vector_store %arg9[%c0_22, %c0_23], %35 {strides = array<i32>} : memref<6x1xi32, #tpu.memory_space<vmem>>, vector<6x1xi32>,
    %c0_24 = arith.constant 0 : index
    %c0_25 = arith.constant 0 : index
    %37 = vector.load %arg10[%c0_24, %c0_25] : memref<6x1xi32, #tpu.memory_space<vmem>>, vector<6x1xi32>
    %c-1_i32_26 = arith.constant -1 : i32
    %38 = vector.shape_cast %9 : vector<1x256xi32> to vector<1x256xi32>
    %39 = vector.broadcast %38 : vector<1x256xi32> to vector<6x256xi32>
    %40 = vector.broadcast %c-1_i32_26 : i32 to vector<6x256xi32>
    %41 = arith.select %5, %39, %40 : vector<6x256xi1>, vector<6x256xi32>
    %cst_27 = arith.constant dense<-2147483648> : vector<6xi32>
    %42 = vector.multi_reduction <maxsi>, %41, %cst_27 [1] : vector<6x256xi32> to vector<6xi32>
    %43 = vector.shape_cast %42 : vector<6xi32> to vector<6x1xi32>
    %44 = arith.maxsi %37, %43 : vector<6x1xi32>
    %c0_28 = arith.constant 0 : index
    %c0_29 = arith.constant 0 : index
    %45 = vector.load %arg10[%c0_28, %c0_29] : memref<6x1xi32, #tpu.memory_space<vmem>>, vector<6x1xi32>
    tpu.vector_store %arg10[%c0_28, %c0_29], %44 {strides = array<i32>} : memref<6x1xi32, #tpu.memory_space<vmem>>, vector<6x1xi32>,
    %c0_i32_30 = arith.constant 0 : i32
    %46 = arith.cmpi eq, %arg1, %c0_i32_30 : i32
    %47 = arith.extui %46 : i1 to i32
    %c0_i32_31 = arith.constant 0 : i32
    %48 = arith.cmpi ne, %47, %c0_i32_31 : i32
    scf.if %48 {
      %c0_32 = arith.constant 0 : index
      %c0_33 = arith.constant 0 : index
      %49 = vector.load %arg9[%c0_32, %c0_33] : memref<6x1xi32, #tpu.memory_space<vmem>>, vector<6x1xi32>
      %c0_i32_34 = arith.constant 0 : i32
      %50 = vector.broadcast %c0_i32_34 : i32 to vector<6x1xi32>
      %51 = arith.cmpi sge, %49, %50 : vector<6x1xi32>
      %52 = tpu.iota {dimensions = array<i32: 1>} : vector<6x128xi32>
      %c0_i32_35 = arith.constant 0 : i32
      %53 = vector.broadcast %c0_i32_35 : i32 to vector<6x128xi32>
      %54 = arith.cmpi eq, %52, %53 : vector<6x128xi32>
      %c0_36 = arith.constant 0 : index
      %c0_37 = arith.constant 0 : index
      %55 = vector.load %arg7[%c0_36, %c0_37] : memref<6x1xi32, #tpu.memory_space<vmem>>, vector<6x1xi32>
      %c1_i32 = arith.constant 1 : i32
      %56 = vector.broadcast %c1_i32 : i32 to vector<6x128xi32>
      %57 = arith.cmpi eq, %52, %56 : vector<6x128xi32>
      %c0_38 = arith.constant 0 : index
      %c0_39 = arith.constant 0 : index
      %58 = vector.load %arg8[%c0_38, %c0_39] : memref<6x1xi32, #tpu.memory_space<vmem>>, vector<6x1xi32>
      %c2_i32 = arith.constant 2 : i32
      %59 = vector.broadcast %c2_i32 : i32 to vector<6x128xi32>
      %60 = arith.cmpi eq, %52, %59 : vector<6x128xi32>
      %c0_40 = arith.constant 0 : index
      %c0_41 = arith.constant 0 : index
      %61 = vector.load %arg9[%c0_40, %c0_41] : memref<6x1xi32, #tpu.memory_space<vmem>>, vector<6x1xi32>
      %c3_i32 = arith.constant 3 : i32
      %62 = vector.broadcast %c3_i32 : i32 to vector<6x128xi32>
      %63 = arith.cmpi eq, %52, %62 : vector<6x128xi32>
      %c0_42 = arith.constant 0 : index
      %c0_43 = arith.constant 0 : index
      %64 = vector.load %arg10[%c0_42, %c0_43] : memref<6x1xi32, #tpu.memory_space<vmem>>, vector<6x1xi32>
      %c0_i32_44 = arith.constant 0 : i32
      %65 = vector.shape_cast %64 : vector<6x1xi32> to vector<6x1xi32>
      %66 = vector.broadcast %65 : vector<6x1xi32> to vector<6x128xi32>
      %67 = vector.broadcast %c0_i32_44 : i32 to vector<6x128xi32>
      %68 = arith.select %63, %66, %67 : vector<6x128xi1>, vector<6x128xi32>
      %69 = vector.shape_cast %61 : vector<6x1xi32> to vector<6x1xi32>
      %70 = vector.broadcast %69 : vector<6x1xi32> to vector<6x128xi32>
      %71 = arith.select %60, %70, %68 : vector<6x128xi1>, vector<6x128xi32>
      %72 = vector.shape_cast %58 : vector<6x1xi32> to vector<6x1xi32>
      %73 = vector.broadcast %72 : vector<6x1xi32> to vector<6x128xi32>
      %74 = arith.select %57, %73, %71 : vector<6x128xi1>, vector<6x128xi32>
      %75 = vector.shape_cast %55 : vector<6x1xi32> to vector<6x1xi32>
      %76 = vector.broadcast %75 : vector<6x1xi32> to vector<6x128xi32>
      %77 = arith.select %54, %76, %74 : vector<6x128xi1>, vector<6x128xi32>
      %c0_i32_45 = arith.constant 0 : i32
      %78 = vector.shape_cast %51 : vector<6x1xi1> to vector<6x1xi1>
      %79 = vector.broadcast %78 : vector<6x1xi1> to vector<6x128xi1>
      %80 = vector.broadcast %c0_i32_45 : i32 to vector<6x128xi32>
      %81 = arith.select %79, %77, %80 : vector<6x128xi1>, vector<6x128xi32>
      %82 = arith.sitofp %81 : vector<6x128xi32> to vector<6x128xf32>
      %c0_46 = arith.constant 0 : index
      %c0_47 = arith.constant 0 : index
      %83 = vector.load %arg6[%c0_46, %c0_47] : memref<6x128xf32, #tpu.memory_space<vmem>>, vector<6x128xf32>
      tpu.vector_store %arg6[%c0_46, %c0_47], %82 {strides = array<i32>} : memref<6x128xf32, #tpu.memory_space<vmem>>, vector<6x128xf32>,
    } else {
    }
    return
  }
  func.func @transform_0(%arg0: i32, %arg1: i32) -> (i32, i32) {
    %c0_i32 = arith.constant 0 : i32
    return %arg0, %arg1 : i32, i32
  }
  func.func @transform_1(%arg0: i32, %arg1: i32) -> (i32, i32) {
    %c0_i32 = arith.constant 0 : i32
    %c0_i32_0 = arith.constant 0 : i32
    return %c0_i32, %arg1 : i32, i32
  }
  func.func @transform_2(%arg0: i32, %arg1: i32) -> (i32, i32) {
    %c0_i32 = arith.constant 0 : i32
    %c0_i32_0 = arith.constant 0 : i32
    return %c0_i32, %arg1 : i32, i32
  }
  func.func @transform_3(%arg0: i32, %arg1: i32) -> (i32, i32) {
    %c0_i32 = arith.constant 0 : i32
    return %arg0, %arg1 : i32, i32
  }
  func.func @transform_4(%arg0: i32, %arg1: i32) -> (i32, i32) {
    %c0_i32 = arith.constant 0 : i32
    %c0_i32_0 = arith.constant 0 : i32
    return %arg0, %c0_i32 : i32, i32
  }
}

</mosaic_0001>

<llo_original>
// kernel: mq_glip_sam2_forward.3
$region0: #{mq_glip_sam2_forward.3}
  #allocation0 [shape = 'u32[]', space=smem, size = 0x4, offset = 0x4, fixed_abs, tag = 'smem constant byte address 0x4 - core index']
  #allocation1 [shape = 'u32[144,128]{1,0:T(1,128)}', space=vmem, size = 0x12000, scoped, tag = 'internal scratch']
  #allocation2 [shape = 's32[6,1]{1,0:T(8,128)}', space=vmem, size = 0x1000, scoped, tag = 'scratch operand']
  #allocation3 [shape = 's32[6,1]{1,0:T(8,128)}', space=vmem, size = 0x1000, scoped, tag = 'scratch operand']
  #allocation4 [shape = 's32[6,1]{1,0:T(8,128)}', space=vmem, size = 0x1000, scoped, tag = 'scratch operand']
  #allocation5 [shape = 's32[6,1]{1,0:T(8,128)}', space=vmem, size = 0x1000, scoped, tag = 'scratch operand']
  %s0 = inlined_call_operand.vmem [shape: f32[6,256], index: 0, kind: input, shape index: {}]
  %s1 = inlined_call_operand.vmem [shape: s32[1,256], index: 1, kind: input, shape index: {}]
  %s2 = inlined_call_operand.vmem [shape: s32[1,256], index: 2, kind: input, shape index: {}]
  %s3 = inlined_call_operand.vmem [shape: s8[6,256], index: 3, kind: output, shape index: {0}]
  %s4 = inlined_call_operand.vmem [shape: f32[6,128], index: 4, kind: output, shape index: {1}]
  %5 = xla_tuple %s3, %s4
  %s6 = sld [smem:[#allocation0]]
  $region38: #{mq_glip_sam2_forward.3} parent=0
    _
  %s8 = ssub.s32 1, %s6
  %s9 = scalar_select 0, %s8, %s6
  // Predicated region
  $region2: #{mq_glip_sam2_forward.3} parent=0 // pred_check
    _
  $region3: #{mq_glip_sam2_forward.3} parent=0 // pred_check_branch
    %11 = sbr.rel (0) target = $region5
  $region4: #{mq_glip_sam2_forward.3} parent=0 // pred_region
    _
  $region5: #{mq_glip_sam2_forward.3} parent=0 // pred_fallthru
    _
  // Predicated region
  $region6: #{mq_glip_sam2_forward.3} parent=0 // pred_check
    _
  $region7: #{mq_glip_sam2_forward.3} parent=0 // pred_check_branch
    %13 = sbr.rel (0) target = $region9
  $region8: #{mq_glip_sam2_forward.3} parent=0 // pred_region
    _
  $region9: #{mq_glip_sam2_forward.3} parent=0 // pred_fallthru
    _
  // Predicated region
  $region10: #{mq_glip_sam2_forward.3} parent=0 // pred_check
    _
  $region11: #{mq_glip_sam2_forward.3} parent=0 // pred_check_branch
    %15 = sbr.rel (0) target = $region13
  $region12: #{mq_glip_sam2_forward.3} parent=0 // pred_region
    _
  $region13: #{mq_glip_sam2_forward.3} parent=0 // pred_fallthru
    _
  %p18 = scmp.eq.s32.totalorder 0, 0
  // Predicated region
  $region14: #{mq_glip_sam2_forward.3} parent=0 // pred_check
    %p19 = pneg %p18
  $region15: #{mq_glip_sam2_forward.3} parent=0 // pred_check_branch
    %21 = sbr.rel (%p19) target = $region17
  $region16: #{mq_glip_sam2_forward.3} parent=0 // pred_region
    %vm22 = vcmask 5120
    %23 = vst.msk [vmem:[#allocation2] sm:$0x3f] %vm22, 1073741824
    %24 = vst.msk [vmem:[#allocation3] sm:$0x3f] %vm22, 1073741824
    %25 = vst.msk [vmem:[#allocation4] sm:$0x3f] %vm22, 4294967295
    %26 = vst.msk [vmem:[#allocation5] sm:$0x3f] %vm22, 4294967295
  $region17: #{mq_glip_sam2_forward.3} parent=0 // pred_fallthru
    _
  %v27 = vld [vmem:[%s0] sm:$0x3f]
  %v28 = vld [vmem:[%s0 + $0x8] sm:$0x3f]
  %vm29 = vcmp.gt.f32.partialorder %v27, 0.0
  %vm30 = vcmp.gt.f32.partialorder %v28, 0.0
  %vm31 = vmpackc.low %vm29, %vm29
  %vm32 = vmpackc.even %vm31, %vm31
  %vm33 = vmpackc.low %vm30, %vm30
  %vm34 = vmpackc.even %vm33, %vm33
  %v35 = vsel %vm32, 16843009, 0
  %v36 = vsel %vm34, 16843009, 0
  %v37 = vunpack.c.0.s8 %v35
  %v38 = vunpack.c.0.s8 %v36
  %v39 = vpack.c.b16 %v38, %v37
  %v40 = vpack.c.b8 %v39, %v39
  %vm41 = vcmask 1041408
  %vm42 = vsmask.f32 1280
  %vm43 = vmand %vm41, %vm42
  %vm44 = vcmask 1043458
  %vm45 = vsmask.f32 3328
  %vm46 = vmand %vm44, %vm45
  %vm47 = vmor %vm46, %vm43
  %v48 = vld [vmem:[%s3] sm:$0xf]
  %v49 = vsel %vm47, %v40, %v48
  %50 = vst [vmem:[%s3] sm:$0xf] %v49
  %v51 = vld [vmem:[%s1] sm:$0x3]
  %v52 = vld [vmem:[%s2] sm:$0x3]
  %v53 = vld [vmem:[#allocation2] sm:$0x3f]
  %v54 = vlaneseq
  %v55 = vshrl.u32 %v54, 7
  %v56 = vsub.s32 0, %v55
  %v57 = vrot.slane %v51, %v56
  %v58 = vlaneseq
  %v59 = vshrl.u32 %v58, 7
  %v60 = vsub.s32 1, %v59
  %v61 = vrot.slane %v51, %v60
  %v62 = vsel %vm29, %v57, 1073741824
  %v63 = vsel %vm30, %v61, 1073741824
  %vm64 = vcmask 1045504
  %v65 = vsel %vm64, %v62, 2147483647
  %v66 = vsel %vm64, %v63, 2147483647
  %vm67 = vcmp.lt.s32.totalorder %v65, %v66
  %v68 = vsel %vm67, %v65, %v66
  %v69 = vand.u32 %v68, 65535
  %v70 = vshra.s32 %v68, 16
  %v71 = vcvt.s32.f32 %v69
  %v72 = vcvt.s32.f32 %v70
  %73 = vmin.xlane.f32.xlu0 %v72
  %v74 = vpop.xlane.xlu0 %73
  %vm75 = vcmp.eq.f32.partialorder %v72, %v74
  %v76 = vsel %vm75, %v71, inf
  %77 = vmin.xlane.f32.xlu0 %v76
  %v78 = vpop.xlane.xlu0 %77
  %v79 = vcvt.f32.s32 %v78
  %v80 = vcvt.f32.s32 %v74
  %v81 = vshll.u32 %v80, 16
  %v82 = vadd.s32 %v81, %v79
  %vm83 = vcmp.lt.s32.totalorder %v53, %v82
  %v84 = vsel %vm83, %v53, %v82
  %vm85 = vcmask 5120
  %86 = vst.msk [vmem:[#allocation2] sm:$0x3f] %vm85, %v84
  %v87 = vld [vmem:[#allocation3] sm:$0x3f]
  %v88 = vlaneseq
  %v89 = vshrl.u32 %v88, 7
  %v90 = vsub.s32 0, %v89
  %v91 = vrot.slane %v52, %v90
  %v92 = vlaneseq
  %v93 = vshrl.u32 %v92, 7
  %v94 = vsub.s32 1, %v93
  %v95 = vrot.slane %v52, %v94
  %v96 = vsel %vm29, %v91, 1073741824
  %v97 = vsel %vm30, %v95, 1073741824
  %v98 = vsel %vm64, %v96, 2147483647
  %v99 = vsel %vm64, %v97, 2147483647
  %vm100 = vcmp.lt.s32.totalorder %v98, %v99
  %v101 = vsel %vm100, %v98, %v99
  %v102 = vand.u32 %v101, 65535
  %v103 = vshra.s32 %v101, 16
  %v104 = vcvt.s32.f32 %v102
  %v105 = vcvt.s32.f32 %v103
  %106 = vmin.xlane.f32.xlu0 %v105
  %v107 = vpop.xlane.xlu0 %106
  %vm108 = vcmp.eq.f32.partialorder %v105, %v107
  %v109 = vsel %vm108, %v104, inf
  %110 = vmin.xlane.f32.xlu0 %v109
  %v111 = vpop.xlane.xlu0 %110
  %v112 = vcvt.f32.s32 %v111
  %v113 = vcvt.f32.s32 %v107
  %v114 = vshll.u32 %v113, 16
  %v115 = vadd.s32 %v114, %v112
  %vm116 = vcmp.lt.s32.totalorder %v87, %v115
  %v117 = vsel %vm116, %v87, %v115
  %118 = vst.msk [vmem:[#allocation3] sm:$0x3f] %vm85, %v117
  %v119 = vld [vmem:[#allocation4] sm:$0x3f]
  %v120 = vsel %vm29, %v57, 4294967295
  %v121 = vsel %vm30, %v61, 4294967295
  %v122 = vsel %vm64, %v120, 2147483648
  %v123 = vsel %vm64, %v121, 2147483648
  %vm124 = vcmp.gt.s32.totalorder %v122, %v123
  %v125 = vsel %vm124, %v122, %v123
  %v126 = vand.u32 %v125, 65535
  %v127 = vshra.s32 %v125, 16
  %v128 = vcvt.s32.f32 %v126
  %v129 = vcvt.s32.f32 %v127
  %130 = vmax.xlane.f32.xlu0 %v129
  %v131 = vpop.xlane.xlu0 %130
  %vm132 = vcmp.eq.f32.partialorder %v129, %v131
  %v133 = vsel %vm132, %v128, -inf
  %134 = vmax.xlane.f32.xlu0 %v133
  %v135 = vpop.xlane.xlu0 %134
  %v136 = vcvt.f32.s32 %v135
  %v137 = vcvt.f32.s32 %v131
  %v138 = vshll.u32 %v137, 16
  %v139 = vadd.s32 %v138, %v136
  %vm140 = vcmp.gt.s32.totalorder %v119, %v139
  %v141 = vsel %vm140, %v119, %v139
  %142 = vst.msk [vmem:[#allocation4] sm:$0x3f] %vm85, %v141
  %v143 = vld [vmem:[#allocation5] sm:$0x3f]
  %v144 = vsel %vm29, %v91, 4294967295
  %v145 = vsel %vm30, %v95, 4294967295
  %v146 = vsel %vm64, %v144, 2147483648
  %v147 = vsel %vm64, %v145, 2147483648
  %vm148 = vcmp.gt.s32.totalorder %v146, %v147
  %v149 = vsel %vm148, %v146, %v147
  %v150 = vand.u32 %v149, 65535
  %v151 = vshra.s32 %v149, 16
  %v152 = vcvt.s32.f32 %v150
  %v153 = vcvt.s32.f32 %v151
  %154 = vmax.xlane.f32.xlu0 %v153
  %v155 = vpop.xlane.xlu0 %154
  %vm156 = vcmp.eq.f32.partialorder %v153, %v155
  %v157 = vsel %vm156, %v152, -inf
  %158 = vmax.xlane.f32.xlu0 %v157
  %v159 = vpop.xlane.xlu0 %158
  %v160 = vcvt.f32.s32 %v159
  %v161 = vcvt.f32.s32 %v155
  %v162 = vshll.u32 %v161, 16
  %v163 = vadd.s32 %v162, %v160
  %vm164 = vcmp.gt.s32.totalorder %v143, %v163
  %v165 = vsel %vm164, %v143, %v163
  %166 = vst.msk [vmem:[#allocation5] sm:$0x3f] %vm85, %v165
  // Predicated region
  $region18: #{mq_glip_sam2_forward.3} parent=0 // pred_check
    %p167 = pneg %p18
  $region19: #{mq_glip_sam2_forward.3} parent=0 // pred_check_branch
    %169 = sbr.rel (%p167) target = $region21
  $region20: #{mq_glip_sam2_forward.3} parent=0 // pred_region
    %v170 = vld [vmem:[#allocation4] sm:$0x3f]
    %vm171 = vcmp.ge.s32.totalorder %v170, 0
    %v172 = vlaneseq
    %v173 = vand.u32 %v172, 127
    %vm174 = vcmp.eq.s32.totalorder %v173, 0
    %v175 = vld [vmem:[#allocation2] sm:$0x3f]
    %vm176 = vcmp.eq.s32.totalorder %v173, 1
    %v177 = vld [vmem:[#allocation3] sm:$0x3f]
    %vm178 = vcmp.eq.s32.totalorder %v173, 2
    %vm179 = vcmp.eq.s32.totalorder %v173, 3
    %v180 = vld [vmem:[#allocation5] sm:$0x3f]
    %181 = vset.pattern.permute.xlu0 0
    %182 = vperm.xlu0 %181, %v180
    %v183 = vpop.permute.xlu0 %182
    %v184 = vsel %vm179, %v183, 0
    %185 = vset.pattern.permute.xlu0 0
    %186 = vperm.xlu0 %185, %v170
    %v187 = vpop.permute.xlu0 %186
    %v188 = vsel %vm178, %v187, %v184
    %189 = vset.pattern.permute.xlu0 0
    %190 = vperm.xlu0 %189, %v177
    %v191 = vpop.permute.xlu0 %190
    %v192 = vsel %vm176, %v191, %v188
    %193 = vset.pattern.permute.xlu0 0
    %194 = vperm.xlu0 %193, %v175
    %v195 = vpop.permute.xlu0 %194
    %v196 = vsel %vm174, %v195, %v192
    %v197 = vsel %vm171, 1, 0
    %198 = vset.pattern.permute.xlu0 0
    %199 = vperm.xlu0 %198, %v197
    %v200 = vpop.permute.xlu0 %199
    %vm201 = vcmp.eq.s32.totalorder %v200, 1
    %v202 = vsel %vm201, %v196, 0
    %v203 = vcvt.s32.f32 %v202
    %204 = vst [vmem:[%s4] sm:$0x3f] %v203
  $region21: #{mq_glip_sam2_forward.3} parent=0 // pred_fallthru
    _
  // Predicated region
  $region22: #{mq_glip_sam2_forward.3} parent=0 // pred_check
    _
  $region23: #{mq_glip_sam2_forward.3} parent=0 // pred_check_branch
    %206 = sbr.rel (0) target = $region25
  $region24: #{mq_glip_sam2_forward.3} parent=0 // pred_region
    _
  $region25: #{mq_glip_sam2_forward.3} parent=0 // pred_fallthru
    _
  // Predicated region
  $region26: #{mq_glip_sam2_forward.3} parent=0 // pred_check
    _
  $region27: #{mq_glip_sam2_forward.3} parent=0 // pred_check_branch
    %208 = sbr.rel (0) target = $region29
  $region28: #{mq_glip_sam2_forward.3} parent=0 // pred_region
    _
  $region29: #{mq_glip_sam2_forward.3} parent=0 // pred_fallthru
    _
  // Predicated region
  $region30: #{mq_glip_sam2_forward.3} parent=0 // pred_check
    _
  $region31: #{mq_glip_sam2_forward.3} parent=0 // pred_check_branch
    %210 = sbr.rel (0) target = $region33
  $region32: #{mq_glip_sam2_forward.3} parent=0 // pred_region
    _
  $region33: #{mq_glip_sam2_forward.3} parent=0 // pred_fallthru
    _
  // Predicated region
  $region34: #{mq_glip_sam2_forward.3} parent=0 // pred_check
    _
  $region35: #{mq_glip_sam2_forward.3} parent=0 // pred_check_branch
    %212 = sbr.rel (0) target = $region37
  $region36: #{mq_glip_sam2_forward.3} parent=0 // pred_region
    _
  $region37: #{mq_glip_sam2_forward.3} parent=0 // pred_fallthru
    _

// kernel: mq_glip_sam2_forward.2
$region0: #{mq_glip_sam2_forward.2}
  #allocation0 [shape = 'u32[]', space=smem, size = 0x4, offset = 0x4, fixed_abs, tag = 'smem constant byte address 0x4 - core index']
  #allocation1 [shape = 'u32[144,128]{1,0:T(1,128)}', space=vmem, size = 0x12000, scoped, tag = 'internal scratch']
  %s0 = inlined_call_operand.vmem [shape: bf16[8,128], index: 0, kind: input, shape index: {}]
  %s1 = inlined_call_operand.vmem [shape: bf16[128,128], index: 1, kind: input, shape index: {}]
  %s2 = inlined_call_operand.vmem [shape: f32[8,128], index: 2, kind: output, shape index: {}]
  %s3 = sld [smem:[#allocation0]]
  $region18: #{mq_glip_sam2_forward.2} parent=0
    _
  %s5 = ssub.s32 1, %s3
  %s6 = scalar_select 0, %s5, %s3
  // Predicated region
  $region2: #{mq_glip_sam2_forward.2} parent=0 // pred_check
    _
  $region3: #{mq_glip_sam2_forward.2} parent=0 // pred_check_branch
    %8 = sbr.rel (0) target = $region5
  $region4: #{mq_glip_sam2_forward.2} parent=0 // pred_region
    _
  $region5: #{mq_glip_sam2_forward.2} parent=0 // pred_fallthru
    _
  // Predicated region
  $region6: #{mq_glip_sam2_forward.2} parent=0 // pred_check
    _
  $region7: #{mq_glip_sam2_forward.2} parent=0 // pred_check_branch
    %10 = sbr.rel (0) target = $region9
  $region8: #{mq_glip_sam2_forward.2} parent=0 // pred_region
    _
  $region9: #{mq_glip_sam2_forward.2} parent=0 // pred_fallthru
    _
  %v12 = vld [vmem:[%s0] sm:$0xf]
  %v13 = vld [vmem:[%s1] sm:$0xf]
  %v14 = vld [vmem:[%s1 + $0x4] sm:$0xf]
  %v15 = vld [vmem:[%s1 + $0x8] sm:$0xf]
  %v16 = vld [vmem:[%s1 + $0xc] sm:$0xf]
  %v17 = vld [vmem:[%s1 + $0x10] sm:$0xf]
  %v18 = vld [vmem:[%s1 + $0x14] sm:$0xf]
  %v19 = vld [vmem:[%s1 + $0x18] sm:$0xf]
  %v20 = vld [vmem:[%s1 + $0x1c] sm:$0xf]
  %v21 = vld [vmem:[%s1 + $0x20] sm:$0xf]
  %v22 = vld [vmem:[%s1 + $0x24] sm:$0xf]
  %v23 = vld [vmem:[%s1 + $0x28] sm:$0xf]
  %v24 = vld [vmem:[%s1 + $0x2c] sm:$0xf]
  %v25 = vld [vmem:[%s1 + $0x30] sm:$0xf]
  %v26 = vld [vmem:[%s1 + $0x34] sm:$0xf]
  %v27 = vld [vmem:[%s1 + $0x38] sm:$0xf]
  %v28 = vld [vmem:[%s1 + $0x3c] sm:$0xf]
  %v45 = vunpack.c.l.b16 %v13
  %v46 = vunpack.c.l.b16 %v14
  %v47 = vunpack.c.l.b16 %v15
  %v48 = vunpack.c.l.b16 %v16
  %v49 = vunpack.c.l.b16 %v17
  %v50 = vunpack.c.l.b16 %v18
  %v51 = vunpack.c.l.b16 %v19
  %v52 = vunpack.c.l.b16 %v20
  %v53 = vunpack.c.l.b16 %v21
  %v54 = vunpack.c.l.b16 %v22
  %v55 = vunpack.c.l.b16 %v23
  %v56 = vunpack.c.l.b16 %v24
  %v57 = vunpack.c.l.b16 %v25
  %v58 = vunpack.c.l.b16 %v26
  %v59 = vunpack.c.l.b16 %v27
  %v60 = vunpack.c.l.b16 %v28
  %v61 = vpack.c.b16 %v46, %v45
  %v62 = vpack.c.b16 %v48, %v47
  %v63 = vpack.c.b16 %v50, %v49
  %v64 = vpack.c.b16 %v52, %v51
  %v65 = vpack.c.b16 %v54, %v53
  %v66 = vpack.c.b16 %v56, %v55
  %v67 = vpack.c.b16 %v58, %v57
  %v68 = vpack.c.b16 %v60, %v59
  %77 = vmatprep.subr.bf16.mxu0 0
  %78 = vmatpush1.bf16.xpose.msra.mxu0 %v68
  %79 = vmatprep.subr.bf16.mxu0 0
  %80 = vmatpush1.bf16.xpose.msra.mxu0 %v67
  %81 = vmatprep.subr.bf16.mxu0 0
  %82 = vmatpush1.bf16.xpose.msra.mxu0 %v66
  %83 = vmatprep.subr.bf16.mxu0 0
  %84 = vmatpush1.bf16.xpose.msra.mxu0 %v65
  %85 = vmatprep.subr.bf16.mxu0 0
  %86 = vmatpush1.bf16.xpose.msra.mxu0 %v64
  %87 = vmatprep.subr.bf16.mxu0 0
  %88 = vmatpush1.bf16.xpose.msra.mxu0 %v63
  %89 = vmatprep.subr.bf16.mxu0 0
  %90 = vmatpush1.bf16.xpose.msra.mxu0 %v62
  %91 = vmatprep.subr.bf16.mxu0 0
  %92 = vmatpush1.bf16.xpose.msra.mxu0 %v61
  %93 = vmatprep.subr.bf16.mxu0 0
  %94 = vmatpush2.bf16.xpose.msra.mxu0 0
  %95 = vmatprep.subr.bf16.mxu0 0
  %96 = vmatpush2.bf16.xpose.msra.mxu0 0
  %97 = vmatprep.subr.bf16.mxu0 0
  %98 = vmatpush2.bf16.xpose.msra.mxu0 0
  %99 = vmatprep.subr.bf16.mxu0 0
  %100 = vmatpush2.bf16.xpose.msra.mxu0 0
  %101 = vmatprep.subr.bf16.mxu0 0
  %102 = vmatpush2.bf16.xpose.msra.mxu0 0
  %103 = vmatprep.subr.bf16.mxu0 0
  %104 = vmatpush2.bf16.xpose.msra.mxu0 0
  %105 = vmatprep.subr.bf16.mxu0 0
  %106 = vmatpush2.bf16.xpose.msra.mxu0 0
  %107 = vmatprep.subr.bf16.mxu0 0
  %108 = vmatpush2.bf16.xpose.msra.mxu0 0
  %109 = vmatprep.mubr.bf16.mxu0 0
  %110 = vmatmul.mubr.bf16.gmra.mxu0 %v12
  %v111 = vpop.f32.mrf.mxu0
  %v112 = vadd.f32 0.0, %v111
  %v113 = vpop.f32.mrf.mxu0
  %v114 = vpop.f32.mrf.mxu0
  %v115 = vpop.f32.mrf.mxu0
  %116 = vdwg.mxu0
  %v117 = vxor.u32 %v112, 2147483648
  %v118 = vmul.f32 %v117, 1.442695
  %v119 = vpow.pop %v118
  %v120 = vadd.f32 %v119, 1.0
  %v121 = vrcp.pop %v120
  %v122 = vmul.f32 1.0, %v121
  %123 = vst [vmem:[%s2] sm:$0xff] %v122
  // Predicated region
  $region10: #{mq_glip_sam2_forward.2} parent=0 // pred_check
    _
  $region11: #{mq_glip_sam2_forward.2} parent=0 // pred_check_branch
    %125 = sbr.rel (0) target = $region13
  $region12: #{mq_glip_sam2_forward.2} parent=0 // pred_region
    _
  $region13: #{mq_glip_sam2_forward.2} parent=0 // pred_fallthru
    _
  // Predicated region
  $region14: #{mq_glip_sam2_forward.2} parent=0 // pred_check
    _
  $region15: #{mq_glip_sam2_forward.2} parent=0 // pred_check_branch
    %127 = sbr.rel (0) target = $region17
  $region16: #{mq_glip_sam2_forward.2} parent=0 // pred_region
    _
  $region17: #{mq_glip_sam2_forward.2} parent=0 // pred_fallthru
    _

</llo_original>
